<compile_context>
chip_gen: v7x
topology: tpu7x:2x2x1
jax: 0.10.0
libtpu: 0.0.40
codegen_flags: <defaults>
</compile_context>

<pallas_src>
import functools

import jax
import jax.numpy as jnp
from jax.experimental import pallas as pl
from jax.experimental.pallas import tpu as pltpu


# ---------------------------------------------------------------------------
# Kernel
# ---------------------------------------------------------------------------
def _gru_cell_kernel(x_ref, h_ref, wi_ref, wh_ref, bi_ref, bhn_ref, out_ref, *,
                     dim):
    """One batch-tile of the GRU cell; weights VMEM-resident across the grid."""
    w_dtype = wi_ref.dtype
    x = x_ref[...].astype(w_dtype)            # (bm, D)  feed MXU in weight dtype
    h = h_ref[...]                            # (bm, D)  kept in its own dtype
    hm = h.astype(w_dtype)

    # Two MXU dots, f32 accumulation, lane-dense N = 3D outputs.
    gi = jnp.dot(x, wi_ref[...], preferred_element_type=jnp.float32) + bi_ref[...]
    gh = jnp.dot(hm, wh_ref[...], preferred_element_type=jnp.float32)

    # Gate slices along the 3D axis in PyTorch [r, z, n] order.
    r = jax.nn.sigmoid(gi[:, :dim] + gh[:, :dim])                    # EUP
    z = jax.nn.sigmoid(gi[:, dim:2 * dim] + gh[:, dim:2 * dim])
    n = jnp.tanh(gi[:, 2 * dim:] + r * (gh[:, 2 * dim:] + bhn_ref[...]))

    h32 = h.astype(jnp.float32)
    # (1 - z) * n + z * h  ==  n + z * (h - n)  -> one fewer full-width VPU op
    out_ref[...] = (n + z * (h32 - n)).astype(out_ref.dtype)


# ---------------------------------------------------------------------------
# One-time parameter repacking (per layer, NOT per step)
# ---------------------------------------------------------------------------
def prepare_gru_params(w_ih, w_hh, b_ih, b_hh, compute_dtype=jnp.bfloat16):
    """Repack torch.nn.GRUCell params for the 2-dot kernel layout.

    w_ih, w_hh : (3D, D) in PyTorch [r, z, n] row order
    b_ih, b_hh : (3D,)
    compute_dtype : dtype fed to the MXU (bf16 recommended; None keeps f32).
    Returns (w_i, w_h, b_i, b_hn):
      w_i  = w_ih^T  (D, 3D)
      w_h  = w_hh^T  (D, 3D)
      b_i  = [b_ir+b_hr, b_iz+b_hz, b_in]  (1, 3D) f32   (r/z biases pre-summed)
      b_hn = b_hn                          (1, D)  f32   (kept separate: r*(..+b_hn))
    """
    D = w_ih.shape[1]
    w_ih = jnp.asarray(w_ih)
    w_hh = jnp.asarray(w_hh)
    if compute_dtype is not None:
        w_ih = w_ih.astype(compute_dtype)
        w_hh = w_hh.astype(compute_dtype)

    w_i = w_ih.T                              # (D, 3D), columns already [r,z,n]
    w_h = w_hh.T                              # (D, 3D)

    b_ih = jnp.asarray(b_ih, jnp.float32)
    b_hh = jnp.asarray(b_hh, jnp.float32)
    b_i = jnp.concatenate([b_ih[:2 * D] + b_hh[:2 * D], b_ih[2 * D:]])[None, :]
    b_hn = b_hh[2 * D:][None, :]
    return w_i, w_h, b_i, b_hn


# ---------------------------------------------------------------------------
# Tiling / VMEM sizing helpers
# ---------------------------------------------------------------------------
def _round_up(x, m):
    return ((x + m - 1) // m) * m


def _pick_batch_tile(B, act_itemsize):
    """Batch tile: sublane-aligned, <=256 rows, >=2 grid steps when splittable."""
    sub = 8 if act_itemsize >= 4 else 16
    if B <= 2 * sub:
        return B                              # too small to split; full-dim block
    # Aim for ~8 grid steps (>=2 for v7x megacore, pipelining headroom), cap 256.
    target = max(sub, pl.cdiv(B, 8))
    return min(256, _round_up(target, sub))


def _vmem_capacity_bytes():
    try:
        return int(pltpu.get_tpu_info().vmem_capacity_bytes)
    except Exception:
        return 64 << 20                       # conservative: v7x per-TC VMEM


def _vmem_limit_bytes(D, bm, w_itemsize, act_itemsize, single_buffer_weights):
    weight_bytes = 2 * D * 3 * D * w_itemsize
    if not single_buffer_weights:
        weight_bytes *= 2                     # default double-buffer allocation
    bias_bytes = 2 * 4 * D * 4
    act_bytes = 2 * 2 * bm * D * act_itemsize          # x, h double-buffered
    out_bytes = 2 * bm * D * act_itemsize               # out double-buffered
    interm_bytes = 2 * bm * 3 * D * 4 + 6 * bm * D * 4  # gi/gh + gates (f32)
    total = (weight_bytes + bias_bytes + act_bytes + out_bytes + interm_bytes
             + (4 << 20))
    cap = _vmem_capacity_bytes()
    return int(min(max(total, 32 << 20), int(cap * 0.85)))


def _const_spec(shape, single_buffer):
    """BlockSpec for a grid-invariant (VMEM-resident) operand."""
    index_map = lambda i: (0,) * len(shape)
    if single_buffer:
        # Constant index_map => one buffer is enough; halves the VMEM footprint.
        return pl.BlockSpec(shape, index_map, pipeline_mode=pl.Buffered(1))
    return pl.BlockSpec(shape, index_map)


# ---------------------------------------------------------------------------
# Forward wrapper
# ---------------------------------------------------------------------------
def memory_layer_forward(hx, inp, params):
    """MemoryLayer.forward(hx, inp) -> new hx, using pre-packed `params`."""
    w_i, w_h, b_i, b_hn = params
    B, D = inp.shape
    act_itemsize = jnp.dtype(hx.dtype).itemsize
    w_itemsize = jnp.dtype(w_i.dtype).itemsize

    bm = _pick_batch_tile(B, act_itemsize)
    grid_b = pl.cdiv(B, bm)
    Bp = grid_b * bm
    if Bp != B:                               # pad to a whole number of tiles
        pad = ((0, Bp - B), (0, 0))
        inp_p = jnp.pad(inp, pad)
        hx_p = jnp.pad(hx, pad)
    else:
        inp_p, hx_p = inp, hx

    kernel = functools.partial(_gru_cell_kernel, dim=D)

    def build(single_buffer_weights):
        vmem = _vmem_limit_bytes(D, bm, w_itemsize, act_itemsize,
                                 single_buffer_weights)
        in_specs = [
            pl.BlockSpec((bm, D), lambda i: (i, 0)),              # inp tile
            pl.BlockSpec((bm, D), lambda i: (i, 0)),              # hx tile
            _const_spec((D, 3 * D), single_buffer_weights),       # W_i
            _const_spec((D, 3 * D), single_buffer_weights),       # W_h
            _const_spec((1, 3 * D), single_buffer_weights),       # b_i
            _const_spec((1, D), single_buffer_weights),           # b_hn
        ]
        return pl.pallas_call(
            kernel,
            out_shape=jax.ShapeDtypeStruct((Bp, D), hx.dtype),
            grid=(grid_b,),
            in_specs=in_specs,
            out_specs=pl.BlockSpec((bm, D), lambda i: (i, 0)),
            compiler_params=pltpu.CompilerParams(
                dimension_semantics=("parallel",),
                vmem_limit_bytes=vmem,
            ),
        )

    try:
        out = build(True)(inp_p, hx_p, w_i, w_h, b_i, b_hn)
    except Exception:
        # pipeline_mode=Buffered(1) unsupported on this JAX/Mosaic version.
        out = build(False)(inp_p, hx_p, w_i, w_h, b_i, b_hn)

    return out if Bp == B else out[:B]


# ---------------------------------------------------------------------------
# Pure-JAX reference (torch.nn.GRUCell semantics)
# ---------------------------------------------------------------------------
def gru_reference(hx, inp, w_ih, w_hh, b_ih, b_hh):
    D = hx.shape[1]
    gi = inp @ w_ih.T + b_ih
    gh = hx @ w_hh.T + b_hh
    i_r, i_z, i_n = gi[:, :D], gi[:, D:2 * D], gi[:, 2 * D:]
    h_r, h_z, h_n = gh[:, :D], gh[:, D:2 * D], gh[:, 2 * D:]
    r = jax.nn.sigmoid(i_r + h_r)
    z = jax.nn.sigmoid(i_z + h_z)
    n = jnp.tanh(i_n + r * h_n)
    return (1.0 - z) * n + z * hx


if __name__ == "__main__":
    batch, dim = 8, 32

    key = jax.random.PRNGKey(0)
    k_hx, k_inp, k_wih, k_whh, k_bih, k_bhh = jax.random.split(key, 6)

    # Deterministic init, same distribution as torch.nn.GRUCell:
    # U(-1/sqrt(hidden), 1/sqrt(hidden)).
    bound = 1.0 / (dim ** 0.5)
    w_ih = jax.random.uniform(k_wih, (3 * dim, dim), jnp.float32, -bound, bound)
    w_hh = jax.random.uniform(k_whh, (3 * dim, dim), jnp.float32, -bound, bound)
    b_ih = jax.random.uniform(k_bih, (3 * dim,), jnp.float32, -bound, bound)
    b_hh = jax.random.uniform(k_bhh, (3 * dim,), jnp.float32, -bound, bound)

    hx = jax.random.normal(k_hx, (batch, dim), jnp.float32)
    inp = jax.random.normal(k_inp, (batch, dim), jnp.float32)

    ref = gru_reference(hx, inp, w_ih, w_hh, b_ih, b_hh)

    # 1) f32 weight path: bitwise-close to the reference.
    params_f32 = prepare_gru_params(w_ih, w_hh, b_ih, b_hh, compute_dtype=None)
    out = jax.block_until_ready(memory_layer_forward(hx, inp, params_f32))
    assert out.shape == (batch, dim)
    assert jnp.allclose(out, ref, atol=2e-5, rtol=2e-5), "f32 path mismatch"

    # 2) bf16 MXU fast path (f32 accumulation / gate math): looser tolerance.
    params_bf16 = prepare_gru_params(w_ih, w_hh, b_ih, b_hh,
                                     compute_dtype=jnp.bfloat16)
    out_bf16 = jax.block_until_ready(memory_layer_forward(hx, inp, params_bf16))
    assert jnp.allclose(out_bf16, ref, atol=5e-2, rtol=5e-2), "bf16 path mismatch"

    # 3) Multi-tile + padded-batch path (exercises grid > 1 and the pad/slice).
    batch2 = 20
    k_hx2, k_inp2 = jax.random.split(jax.random.PRNGKey(1), 2)
    hx2 = jax.random.normal(k_hx2, (batch2, dim), jnp.float32)
    inp2 = jax.random.normal(k_inp2, (batch2, dim), jnp.float32)
    out2 = jax.block_until_ready(memory_layer_forward(hx2, inp2, params_f32))
    ref2 = gru_reference(hx2, inp2, w_ih, w_hh, b_ih, b_hh)
    assert out2.shape == (batch2, dim)
    assert jnp.allclose(out2, ref2, atol=2e-5, rtol=2e-5), "multi-tile mismatch"

    print("KERNEL_OK")
</pallas_src>

<mosaic_0001>
module attributes {stable_mosaic.version = 11 : i64} {
  func.func @_gru_cell_kernel(%arg0: i32, %arg1: memref<8x32xf32, #tpu.memory_space<vmem>>, %arg2: memref<8x32xf32, #tpu.memory_space<vmem>>, %arg3: memref<32x96xf32, #tpu.memory_space<vmem>>, %arg4: memref<32x96xf32, #tpu.memory_space<vmem>>, %arg5: memref<1x96xf32, #tpu.memory_space<vmem>>, %arg6: memref<1x32xf32, #tpu.memory_space<vmem>>, %arg7: memref<8x32xf32, #tpu.memory_space<vmem>>) attributes {dimension_semantics = [#tpu.dimension_semantics<parallel>], iteration_bounds = array<i64: 1>, scalar_prefetch = 0 : i64, scratch_operands = 0 : i64, tpu.core_type = #tpu.core_type<tc>, window_params = [{transform_indices = @transform_0, window_bounds = array<i64: 8, 32>}, {transform_indices = @transform_1, window_bounds = array<i64: 8, 32>}, {pipeline_mode = #tpu.pipeline_mode<synchronous>, transform_indices = @transform_2, window_bounds = array<i64: 32, 96>}, {pipeline_mode = #tpu.pipeline_mode<synchronous>, transform_indices = @transform_3, window_bounds = array<i64: 32, 96>}, {pipeline_mode = #tpu.pipeline_mode<synchronous>, transform_indices = @transform_4, window_bounds = array<i64: 1, 96>}, {pipeline_mode = #tpu.pipeline_mode<synchronous>, transform_indices = @transform_5, window_bounds = array<i64: 1, 32>}, {transform_indices = @transform_6, window_bounds = array<i64: 8, 32>}]} {
    %c0 = arith.constant 0 : index
    %c0_0 = arith.constant 0 : index
    %0 = vector.load %arg1[%c0, %c0_0] : memref<8x32xf32, #tpu.memory_space<vmem>>, vector<8x32xf32>
    %c0_1 = arith.constant 0 : index
    %c0_2 = arith.constant 0 : index
    %1 = vector.load %arg2[%c0_1, %c0_2] : memref<8x32xf32, #tpu.memory_space<vmem>>, vector<8x32xf32>
    %c0_3 = arith.constant 0 : index
    %c0_4 = arith.constant 0 : index
    %2 = vector.load %arg3[%c0_3, %c0_4] : memref<32x96xf32, #tpu.memory_space<vmem>>, vector<32x96xf32>
    %cst = arith.constant dense<0.000000e+00> : vector<8x96xf32>
    %3 = tpu.matmul %0, %2, %cst {dimension_numbers = #tpu.dot_dimension_numbers<[1], [0], [0], [1], [0, 0, 1, 1], [], []>} : vector<8x32xf32>, vector<32x96xf32>, vector<8x96xf32> -> vector<8x96xf32>
    %c0_5 = arith.constant 0 : index
    %c0_6 = arith.constant 0 : index
    %4 = vector.load %arg5[%c0_5, %c0_6] : memref<1x96xf32, #tpu.memory_space<vmem>>, vector<1x96xf32>
    %5 = vector.broadcast %4 : vector<1x96xf32> to vector<8x96xf32>
    %6 = arith.addf %3, %5 : vector<8x96xf32>
    %c0_7 = arith.constant 0 : index
    %c0_8 = arith.constant 0 : index
    %7 = vector.load %arg4[%c0_7, %c0_8] : memref<32x96xf32, #tpu.memory_space<vmem>>, vector<32x96xf32>
    %cst_9 = arith.constant dense<0.000000e+00> : vector<8x96xf32>
    %8 = tpu.matmul %1, %7, %cst_9 {dimension_numbers = #tpu.dot_dimension_numbers<[1], [0], [0], [1], [0, 0, 1, 1], [], []>} : vector<8x32xf32>, vector<32x96xf32>, vector<8x96xf32> -> vector<8x96xf32>
    %9 = vector.extract_strided_slice %6 {offsets = [0, 0], sizes = [8, 32], strides = [1, 1]} : vector<8x96xf32> to vector<8x32xf32>
    %10 = vector.extract_strided_slice %8 {offsets = [0, 0], sizes = [8, 32], strides = [1, 1]} : vector<8x96xf32> to vector<8x32xf32>
    %11 = arith.addf %9, %10 : vector<8x32xf32>
    %12 = arith.negf %11 : vector<8x32xf32>
    %13 = math.exp %12 : vector<8x32xf32>
    %cst_10 = arith.constant 1.000000e+00 : f32
    %14 = vector.broadcast %cst_10 : f32 to vector<8x32xf32>
    %15 = arith.addf %14, %13 : vector<8x32xf32>
    %16 = arith.divf %14, %15 : vector<8x32xf32>
    %17 = vector.extract_strided_slice %6 {offsets = [0, 32], sizes = [8, 32], strides = [1, 1]} : vector<8x96xf32> to vector<8x32xf32>
    %18 = vector.extract_strided_slice %8 {offsets = [0, 32], sizes = [8, 32], strides = [1, 1]} : vector<8x96xf32> to vector<8x32xf32>
    %19 = arith.addf %17, %18 : vector<8x32xf32>
    %20 = arith.negf %19 : vector<8x32xf32>
    %21 = math.exp %20 : vector<8x32xf32>
    %cst_11 = arith.constant 1.000000e+00 : f32
    %22 = vector.broadcast %cst_11 : f32 to vector<8x32xf32>
    %23 = arith.addf %22, %21 : vector<8x32xf32>
    %24 = arith.divf %22, %23 : vector<8x32xf32>
    %25 = vector.extract_strided_slice %6 {offsets = [0, 64], sizes = [8, 32], strides = [1, 1]} : vector<8x96xf32> to vector<8x32xf32>
    %26 = vector.extract_strided_slice %8 {offsets = [0, 64], sizes = [8, 32], strides = [1, 1]} : vector<8x96xf32> to vector<8x32xf32>
    %c0_12 = arith.constant 0 : index
    %c0_13 = arith.constant 0 : index
    %27 = vector.load %arg6[%c0_12, %c0_13] : memref<1x32xf32, #tpu.memory_space<vmem>>, vector<1x32xf32>
    %28 = vector.broadcast %27 : vector<1x32xf32> to vector<8x32xf32>
    %29 = arith.addf %26, %28 : vector<8x32xf32>
    %30 = arith.mulf %16, %29 : vector<8x32xf32>
    %31 = arith.addf %25, %30 : vector<8x32xf32>
    %32 = math.tanh %31 : vector<8x32xf32>
    %33 = arith.subf %1, %32 : vector<8x32xf32>
    %34 = arith.mulf %24, %33 : vector<8x32xf32>
    %35 = arith.addf %32, %34 : vector<8x32xf32>
    %c0_14 = arith.constant 0 : index
    %c0_15 = arith.constant 0 : index
    %36 = vector.load %arg7[%c0_14, %c0_15] : memref<8x32xf32, #tpu.memory_space<vmem>>, vector<8x32xf32>
    tpu.vector_store %arg7[%c0_14, %c0_15], %35 {strides = array<i32>} : memref<8x32xf32, #tpu.memory_space<vmem>>, vector<8x32xf32>,
    return
  }
  func.func @transform_0(%arg0: i32) -> (i32, i32) {
    %c0_i32 = arith.constant 0 : i32
    %c0_i32_0 = arith.constant 0 : i32
    return %arg0, %c0_i32 : i32, i32
  }
  func.func @transform_1(%arg0: i32) -> (i32, i32) {
    %c0_i32 = arith.constant 0 : i32
    %c0_i32_0 = arith.constant 0 : i32
    return %arg0, %c0_i32 : i32, i32
  }
  func.func @transform_2(%arg0: i32) -> (i32, i32) {
    %c0_i32 = arith.constant 0 : i32
    %c0_i32_0 = arith.constant 0 : i32
    %c0_i32_1 = arith.constant 0 : i32
    return %c0_i32, %c0_i32_0 : i32, i32
  }
  func.func @transform_3(%arg0: i32) -> (i32, i32) {
    %c0_i32 = arith.constant 0 : i32
    %c0_i32_0 = arith.constant 0 : i32
    %c0_i32_1 = arith.constant 0 : i32
    return %c0_i32, %c0_i32_0 : i32, i32
  }
  func.func @transform_4(%arg0: i32) -> (i32, i32) {
    %c0_i32 = arith.constant 0 : i32
    %c0_i32_0 = arith.constant 0 : i32
    %c0_i32_1 = arith.constant 0 : i32
    return %c0_i32, %c0_i32_0 : i32, i32
  }
  func.func @transform_5(%arg0: i32) -> (i32, i32) {
    %c0_i32 = arith.constant 0 : i32
    %c0_i32_0 = arith.constant 0 : i32
    %c0_i32_1 = arith.constant 0 : i32
    return %c0_i32, %c0_i32_0 : i32, i32
  }
  func.func @transform_6(%arg0: i32) -> (i32, i32) {
    %c0_i32 = arith.constant 0 : i32
    %c0_i32_0 = arith.constant 0 : i32
    return %arg0, %c0_i32 : i32, i32
  }
}

module attributes {stable_mosaic.version = 11 : i64} {
  func.func @_gru_cell_kernel(%arg0: i32, %arg1: memref<8x32xf32, #tpu.memory_space<vmem>>, %arg2: memref<8x32xf32, #tpu.memory_space<vmem>>, %arg3: memref<32x96xf32, #tpu.memory_space<vmem>>, %arg4: memref<32x96xf32, #tpu.memory_space<vmem>>, %arg5: memref<1x96xf32, #tpu.memory_space<vmem>>, %arg6: memref<1x32xf32, #tpu.memory_space<vmem>>, %arg7: memref<8x32xf32, #tpu.memory_space<vmem>>) attributes {dimension_semantics = [#tpu.dimension_semantics<parallel>], iteration_bounds = array<i64: 1>, scalar_prefetch = 0 : i64, scratch_operands = 0 : i64, tpu.core_type = #tpu.core_type<tc>, window_params = [{transform_indices = @transform_0, window_bounds = array<i64: 8, 32>}, {transform_indices = @transform_1, window_bounds = array<i64: 8, 32>}, {pipeline_mode = #tpu.pipeline_mode<synchronous>, transform_indices = @transform_2, window_bounds = array<i64: 32, 96>}, {pipeline_mode = #tpu.pipeline_mode<synchronous>, transform_indices = @transform_3, window_bounds = array<i64: 32, 96>}, {pipeline_mode = #tpu.pipeline_mode<synchronous>, transform_indices = @transform_4, window_bounds = array<i64: 1, 96>}, {pipeline_mode = #tpu.pipeline_mode<synchronous>, transform_indices = @transform_5, window_bounds = array<i64: 1, 32>}, {transform_indices = @transform_6, window_bounds = array<i64: 8, 32>}]} {
    %c0 = arith.constant 0 : index
    %c0_0 = arith.constant 0 : index
    %0 = vector.load %arg1[%c0, %c0_0] : memref<8x32xf32, #tpu.memory_space<vmem>>, vector<8x32xf32>
    %c0_1 = arith.constant 0 : index
    %c0_2 = arith.constant 0 : index
    %1 = vector.load %arg2[%c0_1, %c0_2] : memref<8x32xf32, #tpu.memory_space<vmem>>, vector<8x32xf32>
    %c0_3 = arith.constant 0 : index
    %c0_4 = arith.constant 0 : index
    %2 = vector.load %arg3[%c0_3, %c0_4] : memref<32x96xf32, #tpu.memory_space<vmem>>, vector<32x96xf32>
    %cst = arith.constant dense<0.000000e+00> : vector<8x96xf32>
    %3 = tpu.matmul %0, %2, %cst {dimension_numbers = #tpu.dot_dimension_numbers<[1], [0], [0], [1], [0, 0, 1, 1], [], []>} : vector<8x32xf32>, vector<32x96xf32>, vector<8x96xf32> -> vector<8x96xf32>
    %c0_5 = arith.constant 0 : index
    %c0_6 = arith.constant 0 : index
    %4 = vector.load %arg5[%c0_5, %c0_6] : memref<1x96xf32, #tpu.memory_space<vmem>>, vector<1x96xf32>
    %5 = vector.broadcast %4 : vector<1x96xf32> to vector<8x96xf32>
    %6 = arith.addf %3, %5 : vector<8x96xf32>
    %c0_7 = arith.constant 0 : index
    %c0_8 = arith.constant 0 : index
    %7 = vector.load %arg4[%c0_7, %c0_8] : memref<32x96xf32, #tpu.memory_space<vmem>>, vector<32x96xf32>
    %cst_9 = arith.constant dense<0.000000e+00> : vector<8x96xf32>
    %8 = tpu.matmul %1, %7, %cst_9 {dimension_numbers = #tpu.dot_dimension_numbers<[1], [0], [0], [1], [0, 0, 1, 1], [], []>} : vector<8x32xf32>, vector<32x96xf32>, vector<8x96xf32> -> vector<8x96xf32>
    %9 = vector.extract_strided_slice %6 {offsets = [0, 0], sizes = [8, 32], strides = [1, 1]} : vector<8x96xf32> to vector<8x32xf32>
    %10 = vector.extract_strided_slice %8 {offsets = [0, 0], sizes = [8, 32], strides = [1, 1]} : vector<8x96xf32> to vector<8x32xf32>
    %11 = arith.addf %9, %10 : vector<8x32xf32>
    %12 = arith.negf %11 : vector<8x32xf32>
    %13 = math.exp %12 : vector<8x32xf32>
    %cst_10 = arith.constant 1.000000e+00 : f32
    %14 = vector.broadcast %cst_10 : f32 to vector<8x32xf32>
    %15 = arith.addf %14, %13 : vector<8x32xf32>
    %16 = arith.divf %14, %15 : vector<8x32xf32>
    %17 = vector.extract_strided_slice %6 {offsets = [0, 32], sizes = [8, 32], strides = [1, 1]} : vector<8x96xf32> to vector<8x32xf32>
    %18 = vector.extract_strided_slice %8 {offsets = [0, 32], sizes = [8, 32], strides = [1, 1]} : vector<8x96xf32> to vector<8x32xf32>
    %19 = arith.addf %17, %18 : vector<8x32xf32>
    %20 = arith.negf %19 : vector<8x32xf32>
    %21 = math.exp %20 : vector<8x32xf32>
    %cst_11 = arith.constant 1.000000e+00 : f32
    %22 = vector.broadcast %cst_11 : f32 to vector<8x32xf32>
    %23 = arith.addf %22, %21 : vector<8x32xf32>
    %24 = arith.divf %22, %23 : vector<8x32xf32>
    %25 = vector.extract_strided_slice %6 {offsets = [0, 64], sizes = [8, 32], strides = [1, 1]} : vector<8x96xf32> to vector<8x32xf32>
    %26 = vector.extract_strided_slice %8 {offsets = [0, 64], sizes = [8, 32], strides = [1, 1]} : vector<8x96xf32> to vector<8x32xf32>
    %c0_12 = arith.constant 0 : index
    %c0_13 = arith.constant 0 : index
    %27 = vector.load %arg6[%c0_12, %c0_13] : memref<1x32xf32, #tpu.memory_space<vmem>>, vector<1x32xf32>
    %28 = vector.broadcast %27 : vector<1x32xf32> to vector<8x32xf32>
    %29 = arith.addf %26, %28 : vector<8x32xf32>
    %30 = arith.mulf %16, %29 : vector<8x32xf32>
    %31 = arith.addf %25, %30 : vector<8x32xf32>
    %32 = math.tanh %31 : vector<8x32xf32>
    %33 = arith.subf %1, %32 : vector<8x32xf32>
    %34 = arith.mulf %24, %33 : vector<8x32xf32>
    %35 = arith.addf %32, %34 : vector<8x32xf32>
    %c0_14 = arith.constant 0 : index
    %c0_15 = arith.constant 0 : index
    %36 = vector.load %arg7[%c0_14, %c0_15] : memref<8x32xf32, #tpu.memory_space<vmem>>, vector<8x32xf32>
    tpu.vector_store %arg7[%c0_14, %c0_15], %35 {strides = array<i32>} : memref<8x32xf32, #tpu.memory_space<vmem>>, vector<8x32xf32>,
    return
  }
  func.func @transform_0(%arg0: i32) -> (i32, i32) {
    %c0_i32 = arith.constant 0 : i32
    %c0_i32_0 = arith.constant 0 : i32
    return %arg0, %c0_i32 : i32, i32
  }
  func.func @transform_1(%arg0: i32) -> (i32, i32) {
    %c0_i32 = arith.constant 0 : i32
    %c0_i32_0 = arith.constant 0 : i32
    return %arg0, %c0_i32 : i32, i32
  }
  func.func @transform_2(%arg0: i32) -> (i32, i32) {
    %c0_i32 = arith.constant 0 : i32
    %c0_i32_0 = arith.constant 0 : i32
    %c0_i32_1 = arith.constant 0 : i32
    return %c0_i32, %c0_i32_0 : i32, i32
  }
  func.func @transform_3(%arg0: i32) -> (i32, i32) {
    %c0_i32 = arith.constant 0 : i32
    %c0_i32_0 = arith.constant 0 : i32
    %c0_i32_1 = arith.constant 0 : i32
    return %c0_i32, %c0_i32_0 : i32, i32
  }
  func.func @transform_4(%arg0: i32) -> (i32, i32) {
    %c0_i32 = arith.constant 0 : i32
    %c0_i32_0 = arith.constant 0 : i32
    %c0_i32_1 = arith.constant 0 : i32
    return %c0_i32, %c0_i32_0 : i32, i32
  }
  func.func @transform_5(%arg0: i32) -> (i32, i32) {
    %c0_i32 = arith.constant 0 : i32
    %c0_i32_0 = arith.constant 0 : i32
    %c0_i32_1 = arith.constant 0 : i32
    return %c0_i32, %c0_i32_0 : i32, i32
  }
  func.func @transform_6(%arg0: i32) -> (i32, i32) {
    %c0_i32 = arith.constant 0 : i32
    %c0_i32_0 = arith.constant 0 : i32
    return %arg0, %c0_i32 : i32, i32
  }
}

</mosaic_0001>

<llo_original>
// kernel: tpu_custom_call.1
$region0: #{tpu_custom_call.1}
  #allocation0 [shape = 'u32[]', space=smem, size = 0x4, offset = 0x4, fixed_abs, tag = 'smem constant byte address 0x4 - core index']
  #allocation1 [shape = 'u32[144,128]{1,0:T(1,128)}', space=vmem, size = 0x12000, scoped, tag = 'internal scratch']
  %s0 = inlined_call_operand.hbm [shape: f32[8,32], index: 0, kind: input, shape index: {}]
  %s1 = inlined_call_operand.hbm [shape: f32[8,32], index: 1, kind: input, shape index: {}]
  %s2 = inlined_call_operand.hbm [shape: f32[32,96], index: 2, kind: input, shape index: {}]
  %s3 = inlined_call_operand.hbm [shape: f32[32,96], index: 3, kind: input, shape index: {}]
  %s4 = inlined_call_operand.vmem [shape: f32[1,96], index: 4, kind: input, shape index: {}]
  %s5 = inlined_call_operand.vmem [shape: f32[1,32], index: 5, kind: input, shape index: {}]
  %s6 = inlined_call_operand.hbm [shape: f32[8,32], index: 6, kind: output, shape index: {}]
  %s7 = sld [smem:[#allocation0]]
  $region50: #{tpu_custom_call.1} parent=0
    _
  %s9 = ssub.s32 1, %s7
  %s10 = scalar_select 0, %s9, %s7
  $region1: #{tpu_custom_call.1} parent=0
    #allocation2 [shape = 'u8[4096]{0}', space=vmem, size = 0x1000, scoped, tag = 'input window, operand 0, single buffered']
    #allocation3 [shape = 's32[1]{0}', space=sflag, size = 0x4, scoped, tag = 'scoped memory for tpu_custom_call.1']
    #allocation4 [shape = 's32[1]{0}', space=sflag, size = 0x4, scoped, tag = 'scoped memory for tpu_custom_call.1']
    #allocation5 [shape = 'u8[4096]{0}', space=vmem, size = 0x1000, scoped, tag = 'input window, operand 1, single buffered']
    #allocation6 [shape = 's32[1]{0}', space=sflag, size = 0x4, scoped, tag = 'scoped memory for tpu_custom_call.1']
    #allocation7 [shape = 'u8[16384]{0}', space=vmem, size = 0x4000, scoped, tag = 'input window, operand 2, single buffered']
    #allocation8 [shape = 'u8[16384]{0}', space=vmem, size = 0x4000, scoped, tag = 'input window, operand 3, single buffered']
    #allocation9 [shape = 's32[1]{0}', space=sflag, size = 0x4, scoped, tag = 'scoped memory for tpu_custom_call.1']
    #allocation10 [shape = 'u8[4096]{0}', space=vmem, size = 0x1000, scoped, tag = 'output window, operand 0, single buffered']
    %11 = vsyncpa [#allocation3], 0
    %12 = vsyncpa [#allocation6], 0
    %13 = vsyncpa [#allocation9], 0
    %14 = vsyncpa [#allocation4], 0
    // Predicated region
    $region2: #{tpu_custom_call.1} parent=1 // pred_check
      _
    $region3: #{tpu_custom_call.1} parent=1 // pred_check_branch
      %16 = sbr.rel (0) target = $region5
    $region4: #{tpu_custom_call.1} parent=1 // pred_region
      %s18 = ssub.s32 128, 128
      %19 = vsyncadd [#allocation3], %s18
      %s21 = sshll.u32 [#allocation2], 4
      %s22 = int_to_ptr.vmem [resolvable:$true] %s21
      %24 = dma.hbm_to_vmem [thread:$0]  %s0, 128, %s22, [#allocation3]
    $region5: #{tpu_custom_call.1} parent=1 // pred_fallthru
      _
    // Predicated region
    $region6: #{tpu_custom_call.1} parent=1 // pred_check
      _
    $region7: #{tpu_custom_call.1} parent=1 // pred_check_branch
      %26 = sbr.rel (0) target = $region9
    $region8: #{tpu_custom_call.1} parent=1 // pred_region
      %s28 = ssub.s32 128, 128
      %29 = vsyncadd [#allocation6], %s28
      %s31 = sshll.u32 [#allocation5], 4
      %s32 = int_to_ptr.vmem [resolvable:$true] %s31
      %34 = dma.hbm_to_vmem [thread:$0]  %s1, 128, %s32, [#allocation6]
    $region9: #{tpu_custom_call.1} parent=1 // pred_fallthru
      _
    // Predicated region
    $region10: #{tpu_custom_call.1} parent=1 // pred_check
      _
    $region11: #{tpu_custom_call.1} parent=1 // pred_check_branch
      %36 = sbr.rel (0) target = $region13
    $region12: #{tpu_custom_call.1} parent=1 // pred_region
      %s38 = ssub.s32 512, 512
      %39 = vsyncadd [#allocation6], %s38
      %s40 = sshll.u32 [#allocation7], 4
      %s41 = int_to_ptr.vmem [resolvable:$true] %s40
      %46 = dma.hbm_to_vmem [thread:$0]  %s2, 512, %s41, [#allocation6], 128, 128, 8
    $region13: #{tpu_custom_call.1} parent=1 // pred_fallthru
      _
    // Predicated region
    $region14: #{tpu_custom_call.1} parent=1 // pred_check
      _
    $region15: #{tpu_custom_call.1} parent=1 // pred_check_branch
      %48 = sbr.rel (0) target = $region17
    $region16: #{tpu_custom_call.1} parent=1 // pred_region
      %s50 = ssub.s32 512, 512
      %51 = vsyncadd [#allocation9], %s50
      %s52 = sshll.u32 [#allocation8], 4
      %s53 = int_to_ptr.vmem [resolvable:$true] %s52
      %58 = dma.hbm_to_vmem [thread:$0]  %s3, 512, %s53, [#allocation9], 128, 128, 8
    $region17: #{tpu_custom_call.1} parent=1 // pred_fallthru
      _
    // Predicated region
    $region18: #{tpu_custom_call.1} parent=1 // pred_check
      _
    $region19: #{tpu_custom_call.1} parent=1 // pred_check_branch
      %60 = sbr.rel (0) target = $region21
    $region20: #{tpu_custom_call.1} parent=1 // pred_region
      _
    $region21: #{tpu_custom_call.1} parent=1 // pred_fallthru
      _
    // Predicated region
    $region22: #{tpu_custom_call.1} parent=1 // pred_check
      _
    $region23: #{tpu_custom_call.1} parent=1 // pred_check_branch
      %62 = sbr.rel (0) target = $region25
    $region24: #{tpu_custom_call.1} parent=1 // pred_region
      _
    $region25: #{tpu_custom_call.1} parent=1 // pred_fallthru
      _
    // Predicated region
    $region26: #{tpu_custom_call.1} parent=1 // pred_check
      _
    $region27: #{tpu_custom_call.1} parent=1 // pred_check_branch
      %64 = sbr.rel (0) target = $region29
    $region28: #{tpu_custom_call.1} parent=1 // pred_region
      %65 = dma.done [#allocation3], 128
    $region29: #{tpu_custom_call.1} parent=1 // pred_fallthru
      _
    // Predicated region
    $region30: #{tpu_custom_call.1} parent=1 // pred_check
      _
    $region31: #{tpu_custom_call.1} parent=1 // pred_check_branch
      %67 = sbr.rel (0) target = $region33
    $region32: #{tpu_custom_call.1} parent=1 // pred_region
      %68 = dma.done [#allocation6], 128
    $region33: #{tpu_custom_call.1} parent=1 // pred_fallthru
      _
    // Predicated region
    $region34: #{tpu_custom_call.1} parent=1 // pred_check
      _
    $region35: #{tpu_custom_call.1} parent=1 // pred_check_branch
      %70 = sbr.rel (0) target = $region37
    $region36: #{tpu_custom_call.1} parent=1 // pred_region
      %71 = dma.done [#allocation6], 512
    $region37: #{tpu_custom_call.1} parent=1 // pred_fallthru
      _
    // Predicated region
    $region38: #{tpu_custom_call.1} parent=1 // pred_check
      _
    $region39: #{tpu_custom_call.1} parent=1 // pred_check_branch
      %73 = sbr.rel (0) target = $region41
    $region40: #{tpu_custom_call.1} parent=1 // pred_region
      %74 = dma.done [#allocation9], 512
    $region41: #{tpu_custom_call.1} parent=1 // pred_fallthru
      _
    %v75 = vld [vmem:[#allocation2] sm:$0xff]
    %v76 = vld [vmem:[#allocation5] sm:$0xff]
    %v77 = vld [vmem:[#allocation7] sm:$0xff]
    %v78 = vld [vmem:[#allocation7 + $0x8] sm:$0xff]
    %v79 = vld [vmem:[#allocation7 + $0x10] sm:$0xff]
    %v80 = vld [vmem:[#allocation7 + $0x18] sm:$0xff]
    %v81 = vld [vmem:[%s4] sm:$0x1]
    %v83 = vlaneseq
    %v84 = vshrl.u32 %v83, 7
    %v85 = vsub.s32 0, %v84
    %v86 = vrot.slane %v81, %v85
    %vm88 = vcmask 261120
    %v90 = vsel %vm88, %v75, 0
    %92 = vmatprep.subr.mxu0 0.0
    %93 = vmatpush1.msra.mxu0 %v77
    %94 = vmatprep.subr.mxu0 0.0
    %95 = vmatpush1.msra.mxu0 %v78
    %96 = vmatprep.subr.mxu0 0.0
    %97 = vmatpush1.msra.mxu0 %v79
    %98 = vmatprep.subr.mxu0 0.0
    %99 = vmatpush1.msra.mxu0 %v80
    %100 = vmatprep.subr.mxu0 0.0
    %101 = vmatpush1.msra.mxu0 0.0
    %102 = vmatprep.subr.mxu0 0.0
    %103 = vmatpush1.msra.mxu0 0.0
    %104 = vmatprep.subr.mxu0 0.0
    %105 = vmatpush1.msra.mxu0 0.0
    %106 = vmatprep.subr.mxu0 0.0
    %107 = vmatpush1.msra.mxu0 0.0
    %108 = vmatprep.subr.mxu0 0.0
    %109 = vmatpush1.msra.mxu0 0.0
    %110 = vmatprep.subr.mxu0 0.0
    %111 = vmatpush1.msra.mxu0 0.0
    %112 = vmatprep.subr.mxu0 0.0
    %113 = vmatpush1.msra.mxu0 0.0
    %114 = vmatprep.subr.mxu0 0.0
    %115 = vmatpush1.msra.mxu0 0.0
    %116 = vmatprep.subr.mxu0 0.0
    %117 = vmatpush1.msra.mxu0 0.0
    %118 = vmatprep.subr.mxu0 0.0
    %119 = vmatpush1.msra.mxu0 0.0
    %120 = vmatprep.subr.mxu0 0.0
    %121 = vmatpush1.msra.mxu0 0.0
    %122 = vmatprep.subr.mxu0 0.0
    %123 = vmatpush1.msra.mxu0 0.0
    %124 = vmatprep.subr.mxu0 0.0
    %125 = vmatpush1.msra.mxu0 0.0
    %126 = vmatprep.subr.mxu0 0.0
    %127 = vmatpush1.msra.mxu0 0.0
    %128 = vmatprep.subr.mxu0 0.0
    %129 = vmatpush1.msra.mxu0 0.0
    %130 = vmatprep.subr.mxu0 0.0
    %131 = vmatpush1.msra.mxu0 0.0
    %132 = vmatprep.subr.mxu0 0.0
    %133 = vmatpush1.msra.mxu0 0.0
    %134 = vmatprep.subr.mxu0 0.0
    %135 = vmatpush1.msra.mxu0 0.0
    %136 = vmatprep.subr.mxu0 0.0
    %137 = vmatpush1.msra.mxu0 0.0
    %138 = vmatprep.subr.mxu0 0.0
    %139 = vmatpush1.msra.mxu0 0.0
    %140 = vmatprep.subr.mxu0 0.0
    %141 = vmatpush1.msra.mxu0 0.0
    %142 = vmatprep.subr.mxu0 0.0
    %143 = vmatpush1.msra.mxu0 0.0
    %144 = vmatprep.subr.mxu0 0.0
    %145 = vmatpush1.msra.mxu0 0.0
    %146 = vmatprep.subr.mxu0 0.0
    %147 = vmatpush1.msra.mxu0 0.0
    %148 = vmatprep.subr.mxu0 0.0
    %149 = vmatpush1.msra.mxu0 0.0
    %150 = vmatprep.subr.mxu0 0.0
    %151 = vmatpush1.msra.mxu0 0.0
    %152 = vmatprep.subr.mxu0 0.0
    %153 = vmatpush1.msra.mxu0 0.0
    %154 = vmatprep.subr.mxu0 0.0
    %155 = vmatpush1.msra.mxu0 0.0
    %156 = vmatprep.mubr.f32.mxu0 0.0
    %157 = vmatmul.mubr.f32.gmra.mrb[0].mxu0 %v90
    %v158 = vpop.f32.mrb[0].mxu0
    %v159 = vadd.f32 %v86, %v158
    %v160 = vpop.f32.mrb[0].mxu0
    %161 = vdwg.mxu0
    %v162 = vld [vmem:[#allocation8] sm:$0xff]
    %v163 = vld [vmem:[#allocation8 + $0x8] sm:$0xff]
    %v164 = vld [vmem:[#allocation8 + $0x10] sm:$0xff]
    %v165 = vld [vmem:[#allocation8 + $0x18] sm:$0xff]
    %v167 = vsel %vm88, %v76, 0
    %169 = vmatprep.subr.mxu0 0.0
    %170 = vmatpush1.msra.mxu0 %v162
    %171 = vmatprep.subr.mxu0 0.0
    %172 = vmatpush1.msra.mxu0 %v163
    %173 = vmatprep.subr.mxu0 0.0
    %174 = vmatpush1.msra.mxu0 %v164
    %175 = vmatprep.subr.mxu0 0.0
    %176 = vmatpush1.msra.mxu0 %v165
    %177 = vmatprep.subr.mxu0 0.0
    %178 = vmatpush1.msra.mxu0 0.0
    %179 = vmatprep.subr.mxu0 0.0
    %180 = vmatpush1.msra.mxu0 0.0
    %181 = vmatprep.subr.mxu0 0.0
    %182 = vmatpush1.msra.mxu0 0.0
    %183 = vmatprep.subr.mxu0 0.0
    %184 = vmatpush1.msra.mxu0 0.0
    %185 = vmatprep.subr.mxu0 0.0
    %186 = vmatpush1.msra.mxu0 0.0
    %187 = vmatprep.subr.mxu0 0.0
    %188 = vmatpush1.msra.mxu0 0.0
    %189 = vmatprep.subr.mxu0 0.0
    %190 = vmatpush1.msra.mxu0 0.0
    %191 = vmatprep.subr.mxu0 0.0
    %192 = vmatpush1.msra.mxu0 0.0
    %193 = vmatprep.subr.mxu0 0.0
    %194 = vmatpush1.msra.mxu0 0.0
    %195 = vmatprep.subr.mxu0 0.0
    %196 = vmatpush1.msra.mxu0 0.0
    %197 = vmatprep.subr.mxu0 0.0
    %198 = vmatpush1.msra.mxu0 0.0
    %199 = vmatprep.subr.mxu0 0.0
    %200 = vmatpush1.msra.mxu0 0.0
    %201 = vmatprep.subr.mxu0 0.0
    %202 = vmatpush1.msra.mxu0 0.0
    %203 = vmatprep.subr.mxu0 0.0
    %204 = vmatpush1.msra.mxu0 0.0
    %205 = vmatprep.subr.mxu0 0.0
    %206 = vmatpush1.msra.mxu0 0.0
    %207 = vmatprep.subr.mxu0 0.0
    %208 = vmatpush1.msra.mxu0 0.0
    %209 = vmatprep.subr.mxu0 0.0
    %210 = vmatpush1.msra.mxu0 0.0
    %211 = vmatprep.subr.mxu0 0.0
    %212 = vmatpush1.msra.mxu0 0.0
    %213 = vmatprep.subr.mxu0 0.0
    %214 = vmatpush1.msra.mxu0 0.0
    %215 = vmatprep.subr.mxu0 0.0
    %216 = vmatpush1.msra.mxu0 0.0
    %217 = vmatprep.subr.mxu0 0.0
    %218 = vmatpush1.msra.mxu0 0.0
    %219 = vmatprep.subr.mxu0 0.0
    %220 = vmatpush1.msra.mxu0 0.0
    %221 = vmatprep.subr.mxu0 0.0
    %222 = vmatpush1.msra.mxu0 0.0
    %223 = vmatprep.subr.mxu0 0.0
    %224 = vmatpush1.msra.mxu0 0.0
    %225 = vmatprep.subr.mxu0 0.0
    %226 = vmatpush1.msra.mxu0 0.0
    %227 = vmatprep.subr.mxu0 0.0
    %228 = vmatpush1.msra.mxu0 0.0
    %229 = vmatprep.subr.mxu0 0.0
    %230 = vmatpush1.msra.mxu0 0.0
    %231 = vmatprep.subr.mxu0 0.0
    %232 = vmatpush1.msra.mxu0 0.0
    %233 = vmatprep.mubr.f32.mxu0 0.0
    %234 = vmatmul.mubr.f32.gmra.mrb[0].mxu0 %v167
    %v235 = vpop.f32.mrb[0].mxu0
    %v236 = vadd.f32 0.0, %v235
    %v237 = vpop.f32.mrb[0].mxu0
    %238 = vdwg.mxu0
    %v239 = vadd.f32 %v159, %v236
    %v240 = vxor.u32 %v239, 2147483648
    %v241 = vmul.f32 %v240, 1.442695
    %v242 = vpow.pop %v241
    %v243 = vadd.f32 %v242, 1.0
    %v244 = vrcp.pop %v243
    %v245 = vmul.f32 1.0, %v244
    %v246 = vld [vmem:[%s5] sm:$0x1]
    %v248 = vlaneseq
    %v249 = vshrl.u32 %v248, 7
    %v250 = vsub.s32 0, %v249
    %v251 = vrot.slane %v246, %v250
    %252 = vrot.lane.b32.xlu0 %v251, 64
    %v253 = vpop.permute.xlu0 %252
    %v255 = vadd.f32 %v236, %v253
    %257 = vrot.lane.b32.xlu0 %v255, 64
    %v258 = vpop.permute.xlu0 %257
    %v260 = vmul.f32 %v245, %v258
    %262 = vrot.lane.b32.xlu0 %v260, 64
    %v263 = vpop.permute.xlu0 %262
    %v265 = vadd.f32 %v159, %v263
    %v266 = vtanh.pop %v265
    %268 = vrot.lane.b32.xlu0 %v266, 64
    %v269 = vpop.permute.xlu0 %268
    %v271 = vsub.f32 %v76, %v269
    %273 = vrot.lane.b32.xlu0 %v271, 32
    %v274 = vpop.permute.xlu0 %273
    %v276 = vmul.f32 %v245, %v274
    %278 = vrot.lane.b32.xlu0 %v276, 32
    %v279 = vpop.permute.xlu0 %278
    %v281 = vadd.f32 %v266, %v279
    %283 = vrot.lane.b32.xlu0 %v281, 64
    %v284 = vpop.permute.xlu0 %283
    %286 = vst.msk [vmem:[#allocation10] sm:$0xff] %vm88, %v284
    // Predicated region
    $region42: #{tpu_custom_call.1} parent=1 // pred_check
      _
    $region43: #{tpu_custom_call.1} parent=1 // pred_check_branch
      %288 = sbr.rel (0) target = $region45
    $region44: #{tpu_custom_call.1} parent=1 // pred_region
      %s290 = ssub.s32 128, 128
      %291 = vsyncadd [#allocation4], %s290
      %s293 = sshll.u32 [#allocation10], 4
      %s294 = int_to_ptr.vmem [resolvable:$true] %s293
      %296 = dma.vmem_to_hbm [thread:$0]  %s294, 128, %s6, [#allocation4]
    $region45: #{tpu_custom_call.1} parent=1 // pred_fallthru
      _
    // Predicated region
    $region46: #{tpu_custom_call.1} parent=1 // pred_check
      _
    $region47: #{tpu_custom_call.1} parent=1 // pred_check_branch
      %298 = sbr.rel (0) target = $region49
    $region48: #{tpu_custom_call.1} parent=1 // pred_region
      %299 = dma.done [#allocation4], 128
    $region49: #{tpu_custom_call.1} parent=1 // pred_fallthru
      _
    %300 = vsyncpa [#allocation3], 1
    %301 = vsyncpa [#allocation6], 1
    %302 = vsyncpa [#allocation9], 1
    %303 = vsyncpa [#allocation4], 1

// kernel: tpu_custom_call.1
$region0: #{tpu_custom_call.1}
  #allocation0 [shape = 'u32[]', space=smem, size = 0x4, offset = 0x4, fixed_abs, tag = 'smem constant byte address 0x4 - core index']
  #allocation1 [shape = 'u32[144,128]{1,0:T(1,128)}', space=vmem, size = 0x12000, scoped, tag = 'internal scratch']
  %s0 = inlined_call_operand.hbm [shape: f32[8,32], index: 0, kind: input, shape index: {}]
  %s1 = inlined_call_operand.hbm [shape: f32[8,32], index: 1, kind: input, shape index: {}]
  %s2 = inlined_call_operand.hbm [shape: f32[32,96], index: 2, kind: input, shape index: {}]
  %s3 = inlined_call_operand.hbm [shape: f32[32,96], index: 3, kind: input, shape index: {}]
  %s4 = inlined_call_operand.vmem [shape: f32[1,96], index: 4, kind: input, shape index: {}]
  %s5 = inlined_call_operand.vmem [shape: f32[1,32], index: 5, kind: input, shape index: {}]
  %s6 = inlined_call_operand.hbm [shape: f32[8,32], index: 6, kind: output, shape index: {}]
  %s7 = sld [smem:[#allocation0]]
  $region50: #{tpu_custom_call.1} parent=0
    _
  %s9 = ssub.s32 1, %s7
  %s10 = scalar_select 0, %s9, %s7
  $region1: #{tpu_custom_call.1} parent=0
    #allocation2 [shape = 'u8[4096]{0}', space=vmem, size = 0x1000, scoped, tag = 'input window, operand 0, single buffered']
    #allocation3 [shape = 's32[1]{0}', space=sflag, size = 0x4, scoped, tag = 'scoped memory for tpu_custom_call.1']
    #allocation4 [shape = 's32[1]{0}', space=sflag, size = 0x4, scoped, tag = 'scoped memory for tpu_custom_call.1']
    #allocation5 [shape = 'u8[4096]{0}', space=vmem, size = 0x1000, scoped, tag = 'input window, operand 1, single buffered']
    #allocation6 [shape = 's32[1]{0}', space=sflag, size = 0x4, scoped, tag = 'scoped memory for tpu_custom_call.1']
    #allocation7 [shape = 'u8[16384]{0}', space=vmem, size = 0x4000, scoped, tag = 'input window, operand 2, single buffered']
    #allocation8 [shape = 'u8[16384]{0}', space=vmem, size = 0x4000, scoped, tag = 'input window, operand 3, single buffered']
    #allocation9 [shape = 's32[1]{0}', space=sflag, size = 0x4, scoped, tag = 'scoped memory for tpu_custom_call.1']
    #allocation10 [shape = 'u8[4096]{0}', space=vmem, size = 0x1000, scoped, tag = 'output window, operand 0, single buffered']
    %11 = vsyncpa [#allocation3], 0
    %12 = vsyncpa [#allocation6], 0
    %13 = vsyncpa [#allocation9], 0
    %14 = vsyncpa [#allocation4], 0
    // Predicated region
    $region2: #{tpu_custom_call.1} parent=1 // pred_check
      _
    $region3: #{tpu_custom_call.1} parent=1 // pred_check_branch
      %16 = sbr.rel (0) target = $region5
    $region4: #{tpu_custom_call.1} parent=1 // pred_region
      %s18 = ssub.s32 128, 128
      %19 = vsyncadd [#allocation3], %s18
      %s21 = sshll.u32 [#allocation2], 4
      %s22 = int_to_ptr.vmem [resolvable:$true] %s21
      %24 = dma.hbm_to_vmem [thread:$0]  %s0, 128, %s22, [#allocation3]
    $region5: #{tpu_custom_call.1} parent=1 // pred_fallthru
      _
    // Predicated region
    $region6: #{tpu_custom_call.1} parent=1 // pred_check
      _
    $region7: #{tpu_custom_call.1} parent=1 // pred_check_branch
      %26 = sbr.rel (0) target = $region9
    $region8: #{tpu_custom_call.1} parent=1 // pred_region
      %s28 = ssub.s32 128, 128
      %29 = vsyncadd [#allocation6], %s28
      %s31 = sshll.u32 [#allocation5], 4
      %s32 = int_to_ptr.vmem [resolvable:$true] %s31
      %34 = dma.hbm_to_vmem [thread:$0]  %s1, 128, %s32, [#allocation6]
    $region9: #{tpu_custom_call.1} parent=1 // pred_fallthru
      _
    // Predicated region
    $region10: #{tpu_custom_call.1} parent=1 // pred_check
      _
    $region11: #{tpu_custom_call.1} parent=1 // pred_check_branch
      %36 = sbr.rel (0) target = $region13
    $region12: #{tpu_custom_call.1} parent=1 // pred_region
      %s38 = ssub.s32 512, 512
      %39 = vsyncadd [#allocation6], %s38
      %s40 = sshll.u32 [#allocation7], 4
      %s41 = int_to_ptr.vmem [resolvable:$true] %s40
      %46 = dma.hbm_to_vmem [thread:$0]  %s2, 512, %s41, [#allocation6], 128, 128, 8
    $region13: #{tpu_custom_call.1} parent=1 // pred_fallthru
      _
    // Predicated region
    $region14: #{tpu_custom_call.1} parent=1 // pred_check
      _
    $region15: #{tpu_custom_call.1} parent=1 // pred_check_branch
      %48 = sbr.rel (0) target = $region17
    $region16: #{tpu_custom_call.1} parent=1 // pred_region
      %s50 = ssub.s32 512, 512
      %51 = vsyncadd [#allocation9], %s50
      %s52 = sshll.u32 [#allocation8], 4
      %s53 = int_to_ptr.vmem [resolvable:$true] %s52
      %58 = dma.hbm_to_vmem [thread:$0]  %s3, 512, %s53, [#allocation9], 128, 128, 8
    $region17: #{tpu_custom_call.1} parent=1 // pred_fallthru
      _
    // Predicated region
    $region18: #{tpu_custom_call.1} parent=1 // pred_check
      _
    $region19: #{tpu_custom_call.1} parent=1 // pred_check_branch
      %60 = sbr.rel (0) target = $region21
    $region20: #{tpu_custom_call.1} parent=1 // pred_region
      _
    $region21: #{tpu_custom_call.1} parent=1 // pred_fallthru
      _
    // Predicated region
    $region22: #{tpu_custom_call.1} parent=1 // pred_check
      _
    $region23: #{tpu_custom_call.1} parent=1 // pred_check_branch
      %62 = sbr.rel (0) target = $region25
    $region24: #{tpu_custom_call.1} parent=1 // pred_region
      _
    $region25: #{tpu_custom_call.1} parent=1 // pred_fallthru
      _
    // Predicated region
    $region26: #{tpu_custom_call.1} parent=1 // pred_check
      _
    $region27: #{tpu_custom_call.1} parent=1 // pred_check_branch
      %64 = sbr.rel (0) target = $region29
    $region28: #{tpu_custom_call.1} parent=1 // pred_region
      %65 = dma.done [#allocation3], 128
    $region29: #{tpu_custom_call.1} parent=1 // pred_fallthru
      _
    // Predicated region
    $region30: #{tpu_custom_call.1} parent=1 // pred_check
      _
    $region31: #{tpu_custom_call.1} parent=1 // pred_check_branch
      %67 = sbr.rel (0) target = $region33
    $region32: #{tpu_custom_call.1} parent=1 // pred_region
      %68 = dma.done [#allocation6], 128
    $region33: #{tpu_custom_call.1} parent=1 // pred_fallthru
      _
    // Predicated region
    $region34: #{tpu_custom_call.1} parent=1 // pred_check
      _
    $region35: #{tpu_custom_call.1} parent=1 // pred_check_branch
      %70 = sbr.rel (0) target = $region37
    $region36: #{tpu_custom_call.1} parent=1 // pred_region
      %71 = dma.done [#allocation6], 512
    $region37: #{tpu_custom_call.1} parent=1 // pred_fallthru
      _
    // Predicated region
    $region38: #{tpu_custom_call.1} parent=1 // pred_check
      _
    $region39: #{tpu_custom_call.1} parent=1 // pred_check_branch
      %73 = sbr.rel (0) target = $region41
    $region40: #{tpu_custom_call.1} parent=1 // pred_region
      %74 = dma.done [#allocation9], 512
    $region41: #{tpu_custom_call.1} parent=1 // pred_fallthru
      _
    %v75 = vld [vmem:[#allocation2] sm:$0xff]
    %v76 = vld [vmem:[#allocation5] sm:$0xff]
    %v77 = vld [vmem:[#allocation7] sm:$0xff]
    %v78 = vld [vmem:[#allocation7 + $0x8] sm:$0xff]
    %v79 = vld [vmem:[#allocation7 + $0x10] sm:$0xff]
    %v80 = vld [vmem:[#allocation7 + $0x18] sm:$0xff]
    %v81 = vld [vmem:[%s4] sm:$0x1]
    %v83 = vlaneseq
    %v84 = vshrl.u32 %v83, 7
    %v85 = vsub.s32 0, %v84
    %v86 = vrot.slane %v81, %v85
    %vm88 = vcmask 261120
    %v90 = vsel %vm88, %v75, 0
    %92 = vmatprep.subr.mxu0 0.0
    %93 = vmatpush1.msra.mxu0 %v77
    %94 = vmatprep.subr.mxu0 0.0
    %95 = vmatpush1.msra.mxu0 %v78
    %96 = vmatprep.subr.mxu0 0.0
    %97 = vmatpush1.msra.mxu0 %v79
    %98 = vmatprep.subr.mxu0 0.0
    %99 = vmatpush1.msra.mxu0 %v80
    %100 = vmatprep.subr.mxu0 0.0
    %101 = vmatpush1.msra.mxu0 0.0
    %102 = vmatprep.subr.mxu0 0.0
    %103 = vmatpush1.msra.mxu0 0.0
    %104 = vmatprep.subr.mxu0 0.0
    %105 = vmatpush1.msra.mxu0 0.0
    %106 = vmatprep.subr.mxu0 0.0
    %107 = vmatpush1.msra.mxu0 0.0
    %108 = vmatprep.subr.mxu0 0.0
    %109 = vmatpush1.msra.mxu0 0.0
    %110 = vmatprep.subr.mxu0 0.0
    %111 = vmatpush1.msra.mxu0 0.0
    %112 = vmatprep.subr.mxu0 0.0
    %113 = vmatpush1.msra.mxu0 0.0
    %114 = vmatprep.subr.mxu0 0.0
    %115 = vmatpush1.msra.mxu0 0.0
    %116 = vmatprep.subr.mxu0 0.0
    %117 = vmatpush1.msra.mxu0 0.0
    %118 = vmatprep.subr.mxu0 0.0
    %119 = vmatpush1.msra.mxu0 0.0
    %120 = vmatprep.subr.mxu0 0.0
    %121 = vmatpush1.msra.mxu0 0.0
    %122 = vmatprep.subr.mxu0 0.0
    %123 = vmatpush1.msra.mxu0 0.0
    %124 = vmatprep.subr.mxu0 0.0
    %125 = vmatpush1.msra.mxu0 0.0
    %126 = vmatprep.subr.mxu0 0.0
    %127 = vmatpush1.msra.mxu0 0.0
    %128 = vmatprep.subr.mxu0 0.0
    %129 = vmatpush1.msra.mxu0 0.0
    %130 = vmatprep.subr.mxu0 0.0
    %131 = vmatpush1.msra.mxu0 0.0
    %132 = vmatprep.subr.mxu0 0.0
    %133 = vmatpush1.msra.mxu0 0.0
    %134 = vmatprep.subr.mxu0 0.0
    %135 = vmatpush1.msra.mxu0 0.0
    %136 = vmatprep.subr.mxu0 0.0
    %137 = vmatpush1.msra.mxu0 0.0
    %138 = vmatprep.subr.mxu0 0.0
    %139 = vmatpush1.msra.mxu0 0.0
    %140 = vmatprep.subr.mxu0 0.0
    %141 = vmatpush1.msra.mxu0 0.0
    %142 = vmatprep.subr.mxu0 0.0
    %143 = vmatpush1.msra.mxu0 0.0
    %144 = vmatprep.subr.mxu0 0.0
    %145 = vmatpush1.msra.mxu0 0.0
    %146 = vmatprep.subr.mxu0 0.0
    %147 = vmatpush1.msra.mxu0 0.0
    %148 = vmatprep.subr.mxu0 0.0
    %149 = vmatpush1.msra.mxu0 0.0
    %150 = vmatprep.subr.mxu0 0.0
    %151 = vmatpush1.msra.mxu0 0.0
    %152 = vmatprep.subr.mxu0 0.0
    %153 = vmatpush1.msra.mxu0 0.0
    %154 = vmatprep.subr.mxu0 0.0
    %155 = vmatpush1.msra.mxu0 0.0
    %156 = vmatprep.mubr.f32.mxu0 0.0
    %157 = vmatmul.mubr.f32.gmra.mrb[0].mxu0 %v90
    %v158 = vpop.f32.mrb[0].mxu0
    %v159 = vadd.f32 %v86, %v158
    %v160 = vpop.f32.mrb[0].mxu0
    %161 = vdwg.mxu0
    %v162 = vld [vmem:[#allocation8] sm:$0xff]
    %v163 = vld [vmem:[#allocation8 + $0x8] sm:$0xff]
    %v164 = vld [vmem:[#allocation8 + $0x10] sm:$0xff]
    %v165 = vld [vmem:[#allocation8 + $0x18] sm:$0xff]
    %v167 = vsel %vm88, %v76, 0
    %169 = vmatprep.subr.mxu0 0.0
    %170 = vmatpush1.msra.mxu0 %v162
    %171 = vmatprep.subr.mxu0 0.0
    %172 = vmatpush1.msra.mxu0 %v163
    %173 = vmatprep.subr.mxu0 0.0
    %174 = vmatpush1.msra.mxu0 %v164
    %175 = vmatprep.subr.mxu0 0.0
    %176 = vmatpush1.msra.mxu0 %v165
    %177 = vmatprep.subr.mxu0 0.0
    %178 = vmatpush1.msra.mxu0 0.0
    %179 = vmatprep.subr.mxu0 0.0
    %180 = vmatpush1.msra.mxu0 0.0
    %181 = vmatprep.subr.mxu0 0.0
    %182 = vmatpush1.msra.mxu0 0.0
    %183 = vmatprep.subr.mxu0 0.0
    %184 = vmatpush1.msra.mxu0 0.0
    %185 = vmatprep.subr.mxu0 0.0
    %186 = vmatpush1.msra.mxu0 0.0
    %187 = vmatprep.subr.mxu0 0.0
    %188 = vmatpush1.msra.mxu0 0.0
    %189 = vmatprep.subr.mxu0 0.0
    %190 = vmatpush1.msra.mxu0 0.0
    %191 = vmatprep.subr.mxu0 0.0
    %192 = vmatpush1.msra.mxu0 0.0
    %193 = vmatprep.subr.mxu0 0.0
    %194 = vmatpush1.msra.mxu0 0.0
    %195 = vmatprep.subr.mxu0 0.0
    %196 = vmatpush1.msra.mxu0 0.0
    %197 = vmatprep.subr.mxu0 0.0
    %198 = vmatpush1.msra.mxu0 0.0
    %199 = vmatprep.subr.mxu0 0.0
    %200 = vmatpush1.msra.mxu0 0.0
    %201 = vmatprep.subr.mxu0 0.0
    %202 = vmatpush1.msra.mxu0 0.0
    %203 = vmatprep.subr.mxu0 0.0
    %204 = vmatpush1.msra.mxu0 0.0
    %205 = vmatprep.subr.mxu0 0.0
    %206 = vmatpush1.msra.mxu0 0.0
    %207 = vmatprep.subr.mxu0 0.0
    %208 = vmatpush1.msra.mxu0 0.0
    %209 = vmatprep.subr.mxu0 0.0
    %210 = vmatpush1.msra.mxu0 0.0
    %211 = vmatprep.subr.mxu0 0.0
    %212 = vmatpush1.msra.mxu0 0.0
    %213 = vmatprep.subr.mxu0 0.0
    %214 = vmatpush1.msra.mxu0 0.0
    %215 = vmatprep.subr.mxu0 0.0
    %216 = vmatpush1.msra.mxu0 0.0
    %217 = vmatprep.subr.mxu0 0.0
    %218 = vmatpush1.msra.mxu0 0.0
    %219 = vmatprep.subr.mxu0 0.0
    %220 = vmatpush1.msra.mxu0 0.0
    %221 = vmatprep.subr.mxu0 0.0
    %222 = vmatpush1.msra.mxu0 0.0
    %223 = vmatprep.subr.mxu0 0.0
    %224 = vmatpush1.msra.mxu0 0.0
    %225 = vmatprep.subr.mxu0 0.0
    %226 = vmatpush1.msra.mxu0 0.0
    %227 = vmatprep.subr.mxu0 0.0
    %228 = vmatpush1.msra.mxu0 0.0
    %229 = vmatprep.subr.mxu0 0.0
    %230 = vmatpush1.msra.mxu0 0.0
    %231 = vmatprep.subr.mxu0 0.0
    %232 = vmatpush1.msra.mxu0 0.0
    %233 = vmatprep.mubr.f32.mxu0 0.0
    %234 = vmatmul.mubr.f32.gmra.mrb[0].mxu0 %v167
    %v235 = vpop.f32.mrb[0].mxu0
    %v236 = vadd.f32 0.0, %v235
    %v237 = vpop.f32.mrb[0].mxu0
    %238 = vdwg.mxu0
    %v239 = vadd.f32 %v159, %v236
    %v240 = vxor.u32 %v239, 2147483648
    %v241 = vmul.f32 %v240, 1.442695
    %v242 = vpow.pop %v241
    %v243 = vadd.f32 %v242, 1.0
    %v244 = vrcp.pop %v243
    %v245 = vmul.f32 1.0, %v244
    %v246 = vld [vmem:[%s5] sm:$0x1]
    %v248 = vlaneseq
    %v249 = vshrl.u32 %v248, 7
    %v250 = vsub.s32 0, %v249
    %v251 = vrot.slane %v246, %v250
    %252 = vrot.lane.b32.xlu0 %v251, 64
    %v253 = vpop.permute.xlu0 %252
    %v255 = vadd.f32 %v236, %v253
    %257 = vrot.lane.b32.xlu0 %v255, 64
    %v258 = vpop.permute.xlu0 %257
    %v260 = vmul.f32 %v245, %v258
    %262 = vrot.lane.b32.xlu0 %v260, 64
    %v263 = vpop.permute.xlu0 %262
    %v265 = vadd.f32 %v159, %v263
    %v266 = vtanh.pop %v265
    %268 = vrot.lane.b32.xlu0 %v266, 64
    %v269 = vpop.permute.xlu0 %268
    %v271 = vsub.f32 %v76, %v269
    %273 = vrot.lane.b32.xlu0 %v271, 32
    %v274 = vpop.permute.xlu0 %273
    %v276 = vmul.f32 %v245, %v274
    %278 = vrot.lane.b32.xlu0 %v276, 32
    %v279 = vpop.permute.xlu0 %278
    %v281 = vadd.f32 %v266, %v279
    %283 = vrot.lane.b32.xlu0 %v281, 64
    %v284 = vpop.permute.xlu0 %283
    %286 = vst.msk [vmem:[#allocation10] sm:$0xff] %vm88, %v284
    // Predicated region
    $region42: #{tpu_custom_call.1} parent=1 // pred_check
      _
    $region43: #{tpu_custom_call.1} parent=1 // pred_check_branch
      %288 = sbr.rel (0) target = $region45
    $region44: #{tpu_custom_call.1} parent=1 // pred_region
      %s290 = ssub.s32 128, 128
      %291 = vsyncadd [#allocation4], %s290
      %s293 = sshll.u32 [#allocation10], 4
      %s294 = int_to_ptr.vmem [resolvable:$true] %s293
      %296 = dma.vmem_to_hbm [thread:$0]  %s294, 128, %s6, [#allocation4]
    $region45: #{tpu_custom_call.1} parent=1 // pred_fallthru
      _
    // Predicated region
    $region46: #{tpu_custom_call.1} parent=1 // pred_check
      _
    $region47: #{tpu_custom_call.1} parent=1 // pred_check_branch
      %298 = sbr.rel (0) target = $region49
    $region48: #{tpu_custom_call.1} parent=1 // pred_region
      %299 = dma.done [#allocation4], 128
    $region49: #{tpu_custom_call.1} parent=1 // pred_fallthru
      _
    %300 = vsyncpa [#allocation3], 1
    %301 = vsyncpa [#allocation6], 1
    %302 = vsyncpa [#allocation9], 1
    %303 = vsyncpa [#allocation4], 1

</llo_original>
